<compile_context>
chip_gen: v6e
topology: v6e:2x2x1
jax: 0.10.0
libtpu: 0.0.40
codegen_flags: <defaults>
</compile_context>

<pallas_src>
import functools

import jax
import jax.numpy as jnp
from jax.experimental import pallas as pl
from jax.experimental.pallas import tpu as pltpu

HIDDEN = 128


def _round_up(x, m):
    return (x + m - 1) // m * m


def _dueling_kernel(x_ref, w1_ref, w23_ref, wh2_ref, b_ref, o_ref, *,
                    out_dim, out_pad):
    H = HIDDEN

    # bf16 only at the MXU inputs; accumulation, biases, ReLU and the mean stay f32.
    x = x_ref[...].astype(jnp.bfloat16)              # (B, in_dim)

    # Packed f32 bias slab (8, BW): row0=b1, row1=b2, row2=[bv1||ba1], row3=fused head-2 bias.
    b1 = b_ref[0:1, 0:H]
    b2 = b_ref[1:2, 0:H]
    bh1 = b_ref[2:3, 0:2 * H]
    bh2 = b_ref[3:4, 0:out_pad]

    # Feature trunk: two 128-wide GEMMs (bf16 in, f32 acc).
    h = jnp.dot(x, w1_ref[...], preferred_element_type=jnp.float32) + b1
    h = jnp.maximum(h, 0.0).astype(jnp.bfloat16)
    h = jnp.dot(h, w23_ref[:, 0:H], preferred_element_type=jnp.float32) + b2
    h = jnp.maximum(h, 0.0).astype(jnp.bfloat16)

    # Fused heads, stage 1: one 128->256 GEMM producing [value_hidden || adv_hidden].
    f1 = jnp.dot(h, w23_ref[:, H:3 * H], preferred_element_type=jnp.float32) + bh1
    f1 = jnp.maximum(f1, 0.0).astype(jnp.bfloat16)   # (B, 256)

    # Fused heads, stage 2: one 256->out_pad lane-dense GEMM.
    #   lanes [0, out_dim) = advantages, lane out_pad-1 = state value,
    #   lanes [out_dim, out_pad-1) are EXACTLY zero (wh2/bh2 pads are zero —
    #   the maskless adv sum below depends on this invariant).
    f2 = jnp.dot(f1, wh2_ref[...], preferred_element_type=jnp.float32) + bh2  # (B, out_pad) f32

    n_rows = f2.shape[0]
    # (1, out_pad) value-lane mask, broadcast by the where (no full-size iota).
    lane = jax.lax.broadcasted_iota(jnp.int32, (1, out_pad), 1)
    val_mask = lane == (out_pad - 1)
    v = jnp.sum(jnp.where(val_mask, f2, 0.0), axis=-1, keepdims=True)   # (B, 1)

    # Padded lanes are exact zeros -> sum(adv) = sum(f2) - sum(v); no adv mask.
    a_mean = (jnp.sum(f2) - jnp.sum(v)) * (1.0 / (n_rows * out_dim))

    # q = v + (a - mean(a)).  Padded / value lanes hold junk that the wrapper
    # slices off; the store itself is a fully lane-dense (unmasked) block.
    o_ref[...] = f2 + (v - a_mean)


def pack_params(p, weight_dtype=jnp.bfloat16):
    """Pack the 12 small parameter tensors into 4 TPU-friendly slabs (one-time cost).

    Weights are stored in `weight_dtype` (bf16 by default) for MXU-native
    matmuls; biases stay f32.  The padded columns of wh2 / bh2 must remain
    exactly zero (the kernel's maskless advantage mean relies on it).
    """
    in_dim = p["w1"].shape[0]
    out_dim = p["wa2"].shape[1]
    H = HIDDEN
    out_pad = _round_up(out_dim + 1, 128)
    bw = max(2 * H, out_pad)

    w1 = p["w1"].astype(weight_dtype)                                   # (in_dim, 128)
    w23 = jnp.concatenate([p["w2"], p["wv1"], p["wa1"]],
                          axis=1).astype(weight_dtype)                  # (128, 384)

    wh2 = jnp.zeros((2 * H, out_pad), jnp.float32)                      # (256, out_pad)
    wh2 = wh2.at[0:H, out_pad - 1].set(p["wv2"][:, 0])                  # value -> last lane
    wh2 = wh2.at[H:2 * H, 0:out_dim].set(p["wa2"])                      # adv   -> lanes [0,out_dim)
    wh2 = wh2.astype(weight_dtype)

    biases = jnp.zeros((8, bw), jnp.float32)
    biases = biases.at[0, 0:H].set(p["b1"][0])
    biases = biases.at[1, 0:H].set(p["b2"][0])
    biases = biases.at[2, 0:H].set(p["bv1"][0])
    biases = biases.at[2, H:2 * H].set(p["ba1"][0])
    biases = biases.at[3, out_pad - 1].set(p["bv2"][0, 0])
    biases = biases.at[3, 0:out_dim].set(p["ba2"][0])

    return {"w1": w1, "w23": w23, "wh2": wh2, "biases": biases,
            "in_dim": in_dim, "out_dim": out_dim, "out_pad": out_pad}


def dueling_forward(state, packed):
    """state: (B, in_dim) float32. packed: output of pack_params(). Returns (B, out_dim) f32."""
    B, in_dim = state.shape
    out_dim = packed["out_dim"]
    out_pad = packed["out_pad"]
    H = HIDDEN

    kernel = functools.partial(_dueling_kernel, out_dim=out_dim, out_pad=out_pad)
    vmem = pl.BlockSpec(memory_space=pltpu.MemorySpace.VMEM)

    w_itemsize = jnp.dtype(packed["w1"].dtype).itemsize
    weight_bytes = (packed["w1"].size + packed["w23"].size +
                    packed["wh2"].size) * w_itemsize + packed["biases"].size * 4
    flops = 2 * B * (in_dim * H + H * H + H * 2 * H + 2 * H * out_pad)
    cost = pl.CostEstimate(
        flops=flops,
        transcendentals=0,
        bytes_accessed=weight_bytes + B * (in_dim + out_pad) * 4,
    )

    # Whole-batch single-shot kernel: give Mosaic an explicit VMEM budget with
    # headroom (activations ~ a few KiB/row), capped at v7x's 64 MiB physical VMEM.
    act_bytes = B * (in_dim + H + 2 * H + 2 * out_pad) * 4
    vmem_limit = int(min(max(2 * (act_bytes + weight_bytes), 32 * 1024 * 1024),
                         64 * 1024 * 1024))

    q_pad = pl.pallas_call(
        kernel,
        out_shape=jax.ShapeDtypeStruct((B, out_pad), jnp.float32),
        in_specs=[vmem] * 5,
        out_specs=vmem,
        cost_estimate=cost,
        compiler_params=pltpu.CompilerParams(vmem_limit_bytes=vmem_limit),
    )(state, packed["w1"], packed["w23"], packed["wh2"], packed["biases"])

    # NOTE: q_pad's padded lanes hold junk (v - a_mean offsets); never consume
    # q_pad directly — always slice to the valid advantage lanes.
    return q_pad[:, :out_dim]


def init_params(key, in_dim, out_dim):
    """Deterministic synthetic init (PyTorch-like uniform fan-in scaling)."""
    def linear(key, fan_in, fan_out):
        kw, kb = jax.random.split(key)
        bound = 1.0 / jnp.sqrt(jnp.float32(fan_in))
        w = jax.random.uniform(kw, (fan_in, fan_out), jnp.float32, -bound, bound)
        b = jax.random.uniform(kb, (1, fan_out), jnp.float32, -bound, bound)
        return w, b

    keys = jax.random.split(key, 6)
    p = {}
    p["w1"], p["b1"] = linear(keys[0], in_dim, HIDDEN)
    p["w2"], p["b2"] = linear(keys[1], HIDDEN, HIDDEN)
    p["wv1"], p["bv1"] = linear(keys[2], HIDDEN, HIDDEN)
    p["wv2"], p["bv2"] = linear(keys[3], HIDDEN, 1)
    p["wa1"], p["ba1"] = linear(keys[4], HIDDEN, HIDDEN)
    p["wa2"], p["ba2"] = linear(keys[5], HIDDEN, out_dim)
    return p


def _reference_forward(state, p):
    """Pure-JAX f32 reference of the PyTorch module."""
    h = jnp.maximum(state @ p["w1"] + p["b1"], 0.0)
    h = jnp.maximum(h @ p["w2"] + p["b2"], 0.0)
    v = jnp.maximum(h @ p["wv1"] + p["bv1"], 0.0) @ p["wv2"] + p["bv2"]
    a = jnp.maximum(h @ p["wa1"] + p["ba1"], 0.0) @ p["wa2"] + p["ba2"]
    return v + (a - jnp.mean(a))


def _reference_forward_bf16(state, p):
    """Emulates the kernel's bf16-matmul-input / f32-accumulate numerics."""
    c = lambda t: t.astype(jnp.bfloat16).astype(jnp.float32)
    dot = lambda a, b: jnp.dot(c(a), c(b), preferred_element_type=jnp.float32)
    h = jnp.maximum(dot(state, p["w1"]) + p["b1"], 0.0)
    h = jnp.maximum(dot(h, p["w2"]) + p["b2"], 0.0)
    v = dot(jnp.maximum(dot(h, p["wv1"]) + p["bv1"], 0.0), p["wv2"]) + p["bv2"]
    a = dot(jnp.maximum(dot(h, p["wa1"]) + p["ba1"], 0.0), p["wa2"]) + p["ba2"]
    return v + (a - jnp.mean(a))


if __name__ == "__main__":
    key = jax.random.PRNGKey(0)
    k_state, k_params = jax.random.split(key)

    B, in_dim, out_dim = 8, 16, 4
    state = jax.random.normal(k_state, (B, in_dim), jnp.float32)
    params = init_params(k_params, in_dim, out_dim)
    packed = pack_params(params)

    q = dueling_forward(state, packed)
    q = jax.block_until_ready(q)
    assert q.shape == (B, out_dim)

    # Tight check against the bf16-emulated numerics of the kernel.
    q_bf16 = _reference_forward_bf16(state, params)
    assert jnp.allclose(q, q_bf16, atol=2e-3, rtol=2e-3), "mismatch vs bf16-emulated reference"

    # Loose check against the f32 PyTorch-equivalent reference (bf16 weight path).
    q_ref = _reference_forward(state, params)
    assert jnp.allclose(q, q_ref, atol=5e-2, rtol=5e-2), "mismatch vs f32 reference"

    print("KERNEL_OK")
</pallas_src>

<mosaic_0001>
module attributes {stable_mosaic.version = 11 : i64} {
  func.func @_dueling_kernel(%arg0: memref<8x16xf32, #tpu.memory_space<vmem>>, %arg1: memref<16x128xbf16, #tpu.memory_space<vmem>>, %arg2: memref<128x384xbf16, #tpu.memory_space<vmem>>, %arg3: memref<256x128xbf16, #tpu.memory_space<vmem>>, %arg4: memref<8x256xf32, #tpu.memory_space<vmem>>, %arg5: memref<8x128xf32, #tpu.memory_space<vmem>>) attributes {dimension_semantics = [], scalar_prefetch = 0 : i64, scratch_operands = 0 : i64, tpu.core_type = #tpu.core_type<tc>} {
    %c0 = arith.constant 0 : index
    %c0_0 = arith.constant 0 : index
    %0 = vector.load %arg0[%c0, %c0_0] : memref<8x16xf32, #tpu.memory_space<vmem>>, vector<8x16xf32>
    %1 = arith.truncf %0 : vector<8x16xf32> to vector<8x16xbf16>
    %c0_1 = arith.constant 0 : index
    %c0_2 = arith.constant 0 : index
    %2 = vector.load %arg4[%c0_1, %c0_2] : memref<8x256xf32, #tpu.memory_space<vmem>>, vector<1x128xf32>
    %c1 = arith.constant 1 : index
    %c0_3 = arith.constant 0 : index
    %3 = vector.load %arg4[%c1, %c0_3] : memref<8x256xf32, #tpu.memory_space<vmem>>, vector<1x128xf32>
    %c2 = arith.constant 2 : index
    %c0_4 = arith.constant 0 : index
    %4 = vector.load %arg4[%c2, %c0_4] : memref<8x256xf32, #tpu.memory_space<vmem>>, vector<1x256xf32>
    %c3 = arith.constant 3 : index
    %c0_5 = arith.constant 0 : index
    %5 = vector.load %arg4[%c3, %c0_5] : memref<8x256xf32, #tpu.memory_space<vmem>>, vector<1x128xf32>
    %c0_6 = arith.constant 0 : index
    %c0_7 = arith.constant 0 : index
    %6 = vector.load %arg1[%c0_6, %c0_7] : memref<16x128xbf16, #tpu.memory_space<vmem>>, vector<16x128xbf16>
    %cst = arith.constant dense<0.000000e+00> : vector<8x128xf32>
    %7 = tpu.matmul %1, %6, %cst {dimension_numbers = #tpu.dot_dimension_numbers<[1], [0], [0], [1], [0, 0, 1, 1], [], []>} : vector<8x16xbf16>, vector<16x128xbf16>, vector<8x128xf32> -> vector<8x128xf32>
    %8 = vector.broadcast %2 : vector<1x128xf32> to vector<8x128xf32>
    %9 = arith.addf %7, %8 : vector<8x128xf32>
    %cst_8 = arith.constant 0.000000e+00 : f32
    %10 = vector.broadcast %cst_8 : f32 to vector<8x128xf32>
    %11 = arith.maximumf %9, %10 : vector<8x128xf32>
    %12 = arith.truncf %11 : vector<8x128xf32> to vector<8x128xbf16>
    %c0_9 = arith.constant 0 : index
    %c0_10 = arith.constant 0 : index
    %13 = vector.load %arg2[%c0_9, %c0_10] : memref<128x384xbf16, #tpu.memory_space<vmem>>, vector<128x128xbf16>
    %cst_11 = arith.constant dense<0.000000e+00> : vector<8x128xf32>
    %14 = tpu.matmul %12, %13, %cst_11 {dimension_numbers = #tpu.dot_dimension_numbers<[1], [0], [0], [1], [0, 0, 1, 1], [], []>} : vector<8x128xbf16>, vector<128x128xbf16>, vector<8x128xf32> -> vector<8x128xf32>
    %15 = vector.broadcast %3 : vector<1x128xf32> to vector<8x128xf32>
    %16 = arith.addf %14, %15 : vector<8x128xf32>
    %cst_12 = arith.constant 0.000000e+00 : f32
    %17 = vector.broadcast %cst_12 : f32 to vector<8x128xf32>
    %18 = arith.maximumf %16, %17 : vector<8x128xf32>
    %19 = arith.truncf %18 : vector<8x128xf32> to vector<8x128xbf16>
    %c0_13 = arith.constant 0 : index
    %c128 = arith.constant 128 : index
    %20 = vector.load %arg2[%c0_13, %c128] : memref<128x384xbf16, #tpu.memory_space<vmem>>, vector<128x256xbf16>
    %cst_14 = arith.constant dense<0.000000e+00> : vector<8x256xf32>
    %21 = tpu.matmul %19, %20, %cst_14 {dimension_numbers = #tpu.dot_dimension_numbers<[1], [0], [0], [1], [0, 0, 1, 1], [], []>} : vector<8x128xbf16>, vector<128x256xbf16>, vector<8x256xf32> -> vector<8x256xf32>
    %22 = vector.broadcast %4 : vector<1x256xf32> to vector<8x256xf32>
    %23 = arith.addf %21, %22 : vector<8x256xf32>
    %cst_15 = arith.constant 0.000000e+00 : f32
    %24 = vector.broadcast %cst_15 : f32 to vector<8x256xf32>
    %25 = arith.maximumf %23, %24 : vector<8x256xf32>
    %26 = arith.truncf %25 : vector<8x256xf32> to vector<8x256xbf16>
    %c0_16 = arith.constant 0 : index
    %c0_17 = arith.constant 0 : index
    %27 = vector.load %arg3[%c0_16, %c0_17] : memref<256x128xbf16, #tpu.memory_space<vmem>>, vector<256x128xbf16>
    %cst_18 = arith.constant dense<0.000000e+00> : vector<8x128xf32>
    %28 = tpu.matmul %26, %27, %cst_18 {dimension_numbers = #tpu.dot_dimension_numbers<[1], [0], [0], [1], [0, 0, 1, 1], [], []>} : vector<8x256xbf16>, vector<256x128xbf16>, vector<8x128xf32> -> vector<8x128xf32>
    %29 = vector.broadcast %5 : vector<1x128xf32> to vector<8x128xf32>
    %30 = arith.addf %28, %29 : vector<8x128xf32>
    %31 = tpu.iota {dimensions = array<i32: 1>} : vector<1x128xi32>
    %c127_i32 = arith.constant 127 : i32
    %32 = vector.broadcast %c127_i32 : i32 to vector<1x128xi32>
    %33 = arith.cmpi eq, %31, %32 : vector<1x128xi32>
    %cst_19 = arith.constant 0.000000e+00 : f32
    %34 = vector.shape_cast %33 : vector<1x128xi1> to vector<1x128xi1>
    %35 = vector.broadcast %34 : vector<1x128xi1> to vector<8x128xi1>
    %36 = vector.broadcast %cst_19 : f32 to vector<8x128xf32>
    %37 = arith.select %35, %30, %36 : vector<8x128xi1>, vector<8x128xf32>
    %cst_20 = arith.constant dense<0.000000e+00> : vector<8xf32>
    %38 = vector.multi_reduction <add>, %37, %cst_20 [1] : vector<8x128xf32> to vector<8xf32>
    %39 = vector.shape_cast %38 : vector<8xf32> to vector<8x1xf32>
    %40 = vector.shape_cast %30 : vector<8x128xf32> to vector<1x8x128xf32>
    %cst_21 = arith.constant dense<0.000000e+00> : vector<1xf32>
    %41 = vector.multi_reduction <add>, %40, %cst_21 [1, 2] : vector<1x8x128xf32> to vector<1xf32>
    %42 = vector.shape_cast %41 : vector<1xf32> to vector<1x1x1xf32>
    %43 = vector.extract %42[0, 0, 0] : f32 from vector<1x1x1xf32>
    %44 = vector.shape_cast %39 : vector<8x1xf32> to vector<1x8x1xf32>
    %cst_22 = arith.constant dense<0.000000e+00> : vector<1xf32>
    %45 = vector.multi_reduction <add>, %44, %cst_22 [1, 2] : vector<1x8x1xf32> to vector<1xf32>
    %46 = vector.shape_cast %45 : vector<1xf32> to vector<1x1x1xf32>
    %47 = vector.extract %46[0, 0, 0] : f32 from vector<1x1x1xf32>
    %48 = arith.subf %43, %47 : f32
    %cst_23 = arith.constant 3.125000e-02 : f32
    %49 = arith.mulf %48, %cst_23 : f32
    %50 = vector.broadcast %49 : f32 to vector<8x1xf32>
    %51 = arith.subf %39, %50 : vector<8x1xf32>
    %52 = vector.broadcast %51 : vector<8x1xf32> to vector<8x128xf32>
    %53 = arith.addf %30, %52 : vector<8x128xf32>
    %c0_24 = arith.constant 0 : index
    %c0_25 = arith.constant 0 : index
    %54 = vector.load %arg5[%c0_24, %c0_25] : memref<8x128xf32, #tpu.memory_space<vmem>>, vector<8x128xf32>
    tpu.vector_store %arg5[%c0_24, %c0_25], %53 {strides = array<i32>} : memref<8x128xf32, #tpu.memory_space<vmem>>, vector<8x128xf32>,
    return
  }
}

</mosaic_0001>

<llo_original>
// kernel: tpu_custom_call.1
$region0: #{tpu_custom_call.1}
  #allocation0 [shape = 'u32[]', space=smem, size = 0x4, offset = 0x4, fixed_abs, tag = 'smem constant byte address 0x4 - core index']
  #allocation1 [shape = 'u32[144,128]{1,0:T(1,128)}', space=vmem, size = 0x12000, scoped, tag = 'internal scratch']
  %s0 = inlined_call_operand.hbm [shape: f32[8,16], index: 0, kind: input, shape index: {}]
  %s1 = inlined_call_operand.hbm [shape: bf16[16,128], index: 1, kind: input, shape index: {}]
  %s2 = inlined_call_operand.hbm [shape: bf16[128,384], index: 2, kind: input, shape index: {}]
  %s3 = inlined_call_operand.hbm [shape: bf16[256,128], index: 3, kind: input, shape index: {}]
  %s4 = inlined_call_operand.hbm [shape: f32[8,256], index: 4, kind: input, shape index: {}]
  %s5 = inlined_call_operand.hbm [shape: f32[8,128], index: 5, kind: output, shape index: {}]
  %s6 = sld [smem:[#allocation0]]
  $region50: #{tpu_custom_call.1} parent=0
    _
  %s8 = ssub.s32 1, %s6
  %s9 = scalar_select 0, %s8, %s6
  $region1: #{tpu_custom_call.1} parent=0
    #allocation2 [shape = 'u8[4096]{0}', space=vmem, size = 0x1000, scoped, tag = 'input window, operand 0, single buffered']
    #allocation3 [shape = 's32[1]{0}', space=sflag, size = 0x4, scoped, tag = 'scoped memory for tpu_custom_call.1']
    #allocation4 [shape = 's32[1]{0}', space=sflag, size = 0x4, scoped, tag = 'scoped memory for tpu_custom_call.1']
    #allocation5 [shape = 'u8[4096]{0}', space=vmem, size = 0x1000, scoped, tag = 'input window, operand 1, single buffered']
    #allocation6 [shape = 's32[1]{0}', space=sflag, size = 0x4, scoped, tag = 'scoped memory for tpu_custom_call.1']
    #allocation7 [shape = 'u8[98304]{0}', space=vmem, size = 0x18000, scoped, tag = 'input window, operand 2, single buffered']
    #allocation8 [shape = 'u8[65536]{0}', space=vmem, size = 0x10000, scoped, tag = 'input window, operand 3, single buffered']
    #allocation9 [shape = 's32[1]{0}', space=sflag, size = 0x4, scoped, tag = 'scoped memory for tpu_custom_call.1']
    #allocation10 [shape = 'u8[8192]{0}', space=vmem, size = 0x2000, scoped, tag = 'input window, operand 4, single buffered']
    #allocation11 [shape = 'u8[4096]{0}', space=vmem, size = 0x1000, scoped, tag = 'output window, operand 0, single buffered']
    %10 = vsyncpa [#allocation3], 0
    %11 = vsyncpa [#allocation6], 0
    %12 = vsyncpa [#allocation9], 0
    %13 = vsyncpa [#allocation4], 0
    // Predicated region
    $region2: #{tpu_custom_call.1} parent=1 // pred_check
      _
    $region3: #{tpu_custom_call.1} parent=1 // pred_check_branch
      %15 = sbr.rel (0) target = $region5
    $region4: #{tpu_custom_call.1} parent=1 // pred_region
      %s17 = ssub.s32 128, 128
      %18 = vsyncadd [#allocation3], %s17
      %s20 = sshll.u32 [#allocation2], 4
      %s21 = int_to_ptr.vmem [resolvable:$true] %s20
      %23 = dma.hbm_to_vmem [thread:$0]  %s0, 128, %s21, [#allocation3]
    $region5: #{tpu_custom_call.1} parent=1 // pred_fallthru
      _
    // Predicated region
    $region6: #{tpu_custom_call.1} parent=1 // pred_check
      _
    $region7: #{tpu_custom_call.1} parent=1 // pred_check_branch
      %25 = sbr.rel (0) target = $region9
    $region8: #{tpu_custom_call.1} parent=1 // pred_region
      %s27 = ssub.s32 128, 128
      %28 = vsyncadd [#allocation6], %s27
      %s29 = sshll.u32 [#allocation5], 4
      %s30 = int_to_ptr.vmem [resolvable:$true] %s29
      %35 = dma.hbm_to_vmem [thread:$0]  %s1, 128, %s30, [#allocation6], 64, 64, 4
    $region9: #{tpu_custom_call.1} parent=1 // pred_fallthru
      _
    // Predicated region
    $region10: #{tpu_custom_call.1} parent=1 // pred_check
      _
    $region11: #{tpu_custom_call.1} parent=1 // pred_check_branch
      %37 = sbr.rel (0) target = $region13
    $region12: #{tpu_custom_call.1} parent=1 // pred_region
      %s39 = ssub.s32 3072, 3072
      %40 = vsyncadd [#allocation6], %s39
      %s41 = sshll.u32 [#allocation7], 4
      %s42 = int_to_ptr.vmem [resolvable:$true] %s41
      %47 = dma.hbm_to_vmem [thread:$0]  %s2, 3072, %s42, [#allocation6], 192, 192, 12
    $region13: #{tpu_custom_call.1} parent=1 // pred_fallthru
      _
    // Predicated region
    $region14: #{tpu_custom_call.1} parent=1 // pred_check
      _
    $region15: #{tpu_custom_call.1} parent=1 // pred_check_branch
      %49 = sbr.rel (0) target = $region17
    $region16: #{tpu_custom_call.1} parent=1 // pred_region
      %s51 = ssub.s32 2048, 2048
      %52 = vsyncadd [#allocation9], %s51
      %s53 = sshll.u32 [#allocation8], 4
      %s54 = int_to_ptr.vmem [resolvable:$true] %s53
      %59 = dma.hbm_to_vmem [thread:$0]  %s3, 2048, %s54, [#allocation9], 64, 64, 4
    $region17: #{tpu_custom_call.1} parent=1 // pred_fallthru
      _
    // Predicated region
    $region18: #{tpu_custom_call.1} parent=1 // pred_check
      _
    $region19: #{tpu_custom_call.1} parent=1 // pred_check_branch
      %61 = sbr.rel (0) target = $region21
    $region20: #{tpu_custom_call.1} parent=1 // pred_region
      %s63 = ssub.s32 256, 256
      %64 = vsyncadd [#allocation9], %s63
      %s66 = sshll.u32 [#allocation10], 4
      %s67 = int_to_ptr.vmem [resolvable:$true] %s66
      %69 = dma.hbm_to_vmem [thread:$0]  %s4, 256, %s67, [#allocation9]
    $region21: #{tpu_custom_call.1} parent=1 // pred_fallthru
      _
    // Predicated region
    $region22: #{tpu_custom_call.1} parent=1 // pred_check
      _
    $region23: #{tpu_custom_call.1} parent=1 // pred_check_branch
      %71 = sbr.rel (0) target = $region25
    $region24: #{tpu_custom_call.1} parent=1 // pred_region
      %72 = dma.done [#allocation3], 128
    $region25: #{tpu_custom_call.1} parent=1 // pred_fallthru
      _
    // Predicated region
    $region26: #{tpu_custom_call.1} parent=1 // pred_check
      _
    $region27: #{tpu_custom_call.1} parent=1 // pred_check_branch
      %74 = sbr.rel (0) target = $region29
    $region28: #{tpu_custom_call.1} parent=1 // pred_region
      %75 = dma.done [#allocation6], 128
    $region29: #{tpu_custom_call.1} parent=1 // pred_fallthru
      _
    // Predicated region
    $region30: #{tpu_custom_call.1} parent=1 // pred_check
      _
    $region31: #{tpu_custom_call.1} parent=1 // pred_check_branch
      %77 = sbr.rel (0) target = $region33
    $region32: #{tpu_custom_call.1} parent=1 // pred_region
      %78 = dma.done [#allocation6], 3072
    $region33: #{tpu_custom_call.1} parent=1 // pred_fallthru
      _
    // Predicated region
    $region34: #{tpu_custom_call.1} parent=1 // pred_check
      _
    $region35: #{tpu_custom_call.1} parent=1 // pred_check_branch
      %80 = sbr.rel (0) target = $region37
    $region36: #{tpu_custom_call.1} parent=1 // pred_region
      %81 = dma.done [#allocation9], 2048
    $region37: #{tpu_custom_call.1} parent=1 // pred_fallthru
      _
    // Predicated region
    $region38: #{tpu_custom_call.1} parent=1 // pred_check
      _
    $region39: #{tpu_custom_call.1} parent=1 // pred_check_branch
      %83 = sbr.rel (0) target = $region41
    $region40: #{tpu_custom_call.1} parent=1 // pred_region
      %84 = dma.done [#allocation9], 256
    $region41: #{tpu_custom_call.1} parent=1 // pred_fallthru
      _
    %v86 = vld [vmem:[#allocation2] sm:$0xff]
    %v87 = vpack.c.bf16 %v86, %v86
    %v88 = vld [vmem:[#allocation10] ss:$0 sm:$0xff]
    %v89 = vld [vmem:[#allocation10 + $0x1] ss:$0 sm:$0xff]
    %s90 = scalar_lea.vmem [#allocation10], 2
    %v91 = vld [vmem:[%s90] ss:$8 sm:$0x3]
    %v92 = vld [vmem:[#allocation10 + $0x3] ss:$0 sm:$0xff]
    %v93 = vld [vmem:[#allocation5] sm:$0xf]
    %v94 = vld [vmem:[#allocation5 + $0x4] sm:$0xf]
    %v97 = vunpack.c.l.b16 %v93
    %v98 = vunpack.c.l.b16 %v94
    %v99 = vpack.c.b16 %v98, %v97
    %vm101 = vcmask 130048
    %v103 = vsel %vm101, %v87, 0
    %105 = vmatprep.subr.bf16.mxu0 0
    %106 = vmatpush1.bf16.msra.mxu0 0
    %107 = vmatprep.subr.bf16.mxu0 0
    %108 = vmatpush1.bf16.msra.mxu0 0
    %109 = vmatprep.subr.bf16.mxu0 0
    %110 = vmatpush1.bf16.msra.mxu0 0
    %111 = vmatprep.subr.bf16.mxu0 0
    %112 = vmatpush1.bf16.msra.mxu0 0
    %113 = vmatprep.subr.bf16.mxu0 0
    %114 = vmatpush1.bf16.msra.mxu0 0
    %115 = vmatprep.subr.bf16.mxu0 0
    %116 = vmatpush1.bf16.msra.mxu0 0
    %117 = vmatprep.subr.bf16.mxu0 0
    %118 = vmatpush1.bf16.msra.mxu0 0
    %119 = vmatprep.subr.bf16.mxu0 0
    %120 = vmatpush1.bf16.msra.mxu0 %v99
    %121 = vmatprep.subr.bf16.mxu0 0
    %122 = vmatpush2.bf16.msra.mxu0 0
    %123 = vmatprep.subr.bf16.mxu0 0
    %124 = vmatpush2.bf16.msra.mxu0 0
    %125 = vmatprep.subr.bf16.mxu0 0
    %126 = vmatpush2.bf16.msra.mxu0 0
    %127 = vmatprep.subr.bf16.mxu0 0
    %128 = vmatpush2.bf16.msra.mxu0 0
    %129 = vmatprep.subr.bf16.mxu0 0
    %130 = vmatpush2.bf16.msra.mxu0 0
    %131 = vmatprep.subr.bf16.mxu0 0
    %132 = vmatpush2.bf16.msra.mxu0 0
    %133 = vmatprep.subr.bf16.mxu0 0
    %134 = vmatpush2.bf16.msra.mxu0 0
    %135 = vmatprep.subr.bf16.mxu0 0
    %136 = vmatpush2.bf16.msra.mxu0 0
    %137 = vmatprep.mubr.bf16.mxu0 0
    %138 = vmatmul.mubr.bf16.gmra.mxu0 %v103
    %v139 = vpop.f32.mrf.mxu0
    %v140 = vadd.f32 %v88, %v139
    %v141 = vpop.f32.mrf.mxu0
    %v142 = vpop.f32.mrf.mxu0
    %v143 = vpop.f32.mrf.mxu0
    %144 = vdwg.mxu0
    %v145 = vmax.f32 %v140, 0.0
    %v146 = vpack.c.bf16 %v145, %v145
    %v147 = vld [vmem:[#allocation7] sm:$0xf]
    %v148 = vld [vmem:[#allocation7 + $0xc] sm:$0xf]
    %v149 = vld [vmem:[#allocation7 + $0x18] sm:$0xf]
    %v150 = vld [vmem:[#allocation7 + $0x24] sm:$0xf]
    %v151 = vld [vmem:[#allocation7 + $0x30] sm:$0xf]
    %v152 = vld [vmem:[#allocation7 + $0x3c] sm:$0xf]
    %v153 = vld [vmem:[#allocation7 + $0x48] sm:$0xf]
    %v154 = vld [vmem:[#allocation7 + $0x54] sm:$0xf]
    %v155 = vld [vmem:[#allocation7 + $0x60] sm:$0xf]
    %v156 = vld [vmem:[#allocation7 + $0x6c] sm:$0xf]
    %v157 = vld [vmem:[#allocation7 + $0x78] sm:$0xf]
    %v158 = vld [vmem:[#allocation7 + $0x84] sm:$0xf]
    %v159 = vld [vmem:[#allocation7 + $0x90] sm:$0xf]
    %v160 = vld [vmem:[#allocation7 + $0x9c] sm:$0xf]
    %v161 = vld [vmem:[#allocation7 + $0xa8] sm:$0xf]
    %v162 = vld [vmem:[#allocation7 + $0xb4] sm:$0xf]
    %v179 = vunpack.c.l.b16 %v147
    %v180 = vunpack.c.l.b16 %v148
    %v181 = vunpack.c.l.b16 %v149
    %v182 = vunpack.c.l.b16 %v150
    %v183 = vunpack.c.l.b16 %v151
    %v184 = vunpack.c.l.b16 %v152
    %v185 = vunpack.c.l.b16 %v153
    %v186 = vunpack.c.l.b16 %v154
    %v187 = vunpack.c.l.b16 %v155
    %v188 = vunpack.c.l.b16 %v156
    %v189 = vunpack.c.l.b16 %v157
    %v190 = vunpack.c.l.b16 %v158
    %v191 = vunpack.c.l.b16 %v159
    %v192 = vunpack.c.l.b16 %v160
    %v193 = vunpack.c.l.b16 %v161
    %v194 = vunpack.c.l.b16 %v162
    %v195 = vpack.c.b16 %v180, %v179
    %v196 = vpack.c.b16 %v182, %v181
    %v197 = vpack.c.b16 %v184, %v183
    %v198 = vpack.c.b16 %v186, %v185
    %v199 = vpack.c.b16 %v188, %v187
    %v200 = vpack.c.b16 %v190, %v189
    %v201 = vpack.c.b16 %v192, %v191
    %v202 = vpack.c.b16 %v194, %v193
    %211 = vmatprep.subr.bf16.mxu0 0
    %212 = vmatpush1.bf16.msra.mxu0 %v202
    %213 = vmatprep.subr.bf16.mxu0 0
    %214 = vmatpush1.bf16.msra.mxu0 %v201
    %215 = vmatprep.subr.bf16.mxu0 0
    %216 = vmatpush1.bf16.msra.mxu0 %v200
    %217 = vmatprep.subr.bf16.mxu0 0
    %218 = vmatpush1.bf16.msra.mxu0 %v199
    %219 = vmatprep.subr.bf16.mxu0 0
    %220 = vmatpush1.bf16.msra.mxu0 %v198
    %221 = vmatprep.subr.bf16.mxu0 0
    %222 = vmatpush1.bf16.msra.mxu0 %v197
    %223 = vmatprep.subr.bf16.mxu0 0
    %224 = vmatpush1.bf16.msra.mxu0 %v196
    %225 = vmatprep.subr.bf16.mxu0 0
    %226 = vmatpush1.bf16.msra.mxu0 %v195
    %227 = vmatprep.subr.bf16.mxu0 0
    %228 = vmatpush2.bf16.msra.mxu0 0
    %229 = vmatprep.subr.bf16.mxu0 0
    %230 = vmatpush2.bf16.msra.mxu0 0
    %231 = vmatprep.subr.bf16.mxu0 0
    %232 = vmatpush2.bf16.msra.mxu0 0
    %233 = vmatprep.subr.bf16.mxu0 0
    %234 = vmatpush2.bf16.msra.mxu0 0
    %235 = vmatprep.subr.bf16.mxu0 0
    %236 = vmatpush2.bf16.msra.mxu0 0
    %237 = vmatprep.subr.bf16.mxu0 0
    %238 = vmatpush2.bf16.msra.mxu0 0
    %239 = vmatprep.subr.bf16.mxu0 0
    %240 = vmatpush2.bf16.msra.mxu0 0
    %241 = vmatprep.subr.bf16.mxu0 0
    %242 = vmatpush2.bf16.msra.mxu0 0
    %243 = vmatprep.mubr.bf16.mxu0 0
    %244 = vmatmul.mubr.bf16.gmra.mxu0 %v146
    %v245 = vpop.f32.mrf.mxu0
    %v246 = vadd.f32 %v89, %v245
    %v247 = vpop.f32.mrf.mxu0
    %v248 = vpop.f32.mrf.mxu0
    %v249 = vpop.f32.mrf.mxu0
    %250 = vdwg.mxu0
    %v251 = vmax.f32 %v246, 0.0
    %v252 = vpack.c.bf16 %v251, %v251
    %v253 = vld [vmem:[#allocation7 + $0x4] sm:$0xff]
    %v254 = vld [vmem:[#allocation7 + $0x10] sm:$0xff]
    %v255 = vld [vmem:[#allocation7 + $0x1c] sm:$0xff]
    %v256 = vld [vmem:[#allocation7 + $0x28] sm:$0xff]
    %v257 = vld [vmem:[#allocation7 + $0x34] sm:$0xff]
    %v258 = vld [vmem:[#allocation7 + $0x40] sm:$0xff]
    %v259 = vld [vmem:[#allocation7 + $0x4c] sm:$0xff]
    %v260 = vld [vmem:[#allocation7 + $0x58] sm:$0xff]
    %v261 = vld [vmem:[#allocation7 + $0x64] sm:$0xff]
    %v262 = vld [vmem:[#allocation7 + $0x70] sm:$0xff]
    %v263 = vld [vmem:[#allocation7 + $0x7c] sm:$0xff]
    %v264 = vld [vmem:[#allocation7 + $0x88] sm:$0xff]
    %v265 = vld [vmem:[#allocation7 + $0x94] sm:$0xff]
    %v266 = vld [vmem:[#allocation7 + $0xa0] sm:$0xff]
    %v267 = vld [vmem:[#allocation7 + $0xac] sm:$0xff]
    %v268 = vld [vmem:[#allocation7 + $0xb8] sm:$0xff]
    %v270 = vlaneseq
    %v271 = vshrl.u32 %v270, 7
    %v272 = vsub.s32 0, %v271
    %v273 = vrot.slane %v91, %v272
    %v274 = vlaneseq
    %v275 = vshrl.u32 %v274, 7
    %v276 = vsub.s32 1, %v275
    %v277 = vrot.slane %v91, %v276
    %v296 = vunpack.c.l.b16 %v253
    %v297 = vunpack.c.h.b16 %v253
    %v298 = vunpack.c.l.b16 %v254
    %v299 = vunpack.c.h.b16 %v254
    %v300 = vunpack.c.l.b16 %v255
    %v301 = vunpack.c.h.b16 %v255
    %v302 = vunpack.c.l.b16 %v256
    %v303 = vunpack.c.h.b16 %v256
    %v304 = vunpack.c.l.b16 %v257
    %v305 = vunpack.c.h.b16 %v257
    %v306 = vunpack.c.l.b16 %v258
    %v307 = vunpack.c.h.b16 %v258
    %v308 = vunpack.c.l.b16 %v259
    %v309 = vunpack.c.h.b16 %v259
    %v310 = vunpack.c.l.b16 %v260
    %v311 = vunpack.c.h.b16 %v260
    %v312 = vunpack.c.l.b16 %v261
    %v313 = vunpack.c.h.b16 %v261
    %v314 = vunpack.c.l.b16 %v262
    %v315 = vunpack.c.h.b16 %v262
    %v316 = vunpack.c.l.b16 %v263
    %v317 = vunpack.c.h.b16 %v263
    %v318 = vunpack.c.l.b16 %v264
    %v319 = vunpack.c.h.b16 %v264
    %v320 = vunpack.c.l.b16 %v265
    %v321 = vunpack.c.h.b16 %v265
    %v322 = vunpack.c.l.b16 %v266
    %v323 = vunpack.c.h.b16 %v266
    %v324 = vunpack.c.l.b16 %v267
    %v325 = vunpack.c.h.b16 %v267
    %v326 = vunpack.c.l.b16 %v268
    %v327 = vunpack.c.h.b16 %v268
    %v328 = vpack.c.b16 %v298, %v296
    %v329 = vpack.c.b16 %v299, %v297
    %v330 = vpack.c.b16 %v302, %v300
    %v331 = vpack.c.b16 %v303, %v301
    %v332 = vpack.c.b16 %v306, %v304
    %v333 = vpack.c.b16 %v307, %v305
    %v334 = vpack.c.b16 %v310, %v308
    %v335 = vpack.c.b16 %v311, %v309
    %v336 = vpack.c.b16 %v314, %v312
    %v337 = vpack.c.b16 %v315, %v313
    %v338 = vpack.c.b16 %v318, %v316
    %v339 = vpack.c.b16 %v319, %v317
    %v340 = vpack.c.b16 %v322, %v320
    %v341 = vpack.c.b16 %v323, %v321
    %v342 = vpack.c.b16 %v326, %v324
    %v343 = vpack.c.b16 %v327, %v325
    %360 = vmatprep.subr.bf16.mxu0 %v343
    %361 = vmatpush1.bf16.msra.mxu0 %v342
    %362 = vmatprep.subr.bf16.mxu0 %v341
    %363 = vmatpush1.bf16.msra.mxu0 %v340
    %364 = vmatprep.subr.bf16.mxu0 %v339
    %365 = vmatpush1.bf16.msra.mxu0 %v338
    %366 = vmatprep.subr.bf16.mxu0 %v337
    %367 = vmatpush1.bf16.msra.mxu0 %v336
    %368 = vmatprep.subr.bf16.mxu0 %v335
    %369 = vmatpush1.bf16.msra.mxu0 %v334
    %370 = vmatprep.subr.bf16.mxu0 %v333
    %371 = vmatpush1.bf16.msra.mxu0 %v332
    %372 = vmatprep.subr.bf16.mxu0 %v331
    %373 = vmatpush1.bf16.msra.mxu0 %v330
    %374 = vmatprep.subr.bf16.mxu0 %v329
    %375 = vmatpush1.bf16.msra.mxu0 %v328
    %376 = vmatprep.subr.bf16.mxu0 0
    %377 = vmatpush2.bf16.msra.mxu0 0
    %378 = vmatprep.subr.bf16.mxu0 0
    %379 = vmatpush2.bf16.msra.mxu0 0
    %380 = vmatprep.subr.bf16.mxu0 0
    %381 = vmatpush2.bf16.msra.mxu0 0
    %382 = vmatprep.subr.bf16.mxu0 0
    %383 = vmatpush2.bf16.msra.mxu0 0
    %384 = vmatprep.subr.bf16.mxu0 0
    %385 = vmatpush2.bf16.msra.mxu0 0
    %386 = vmatprep.subr.bf16.mxu0 0
    %387 = vmatpush2.bf16.msra.mxu0 0
    %388 = vmatprep.subr.bf16.mxu0 0
    %389 = vmatpush2.bf16.msra.mxu0 0
    %390 = vmatprep.subr.bf16.mxu0 0
    %391 = vmatpush2.bf16.msra.mxu0 0
    %392 = vmatprep.mubr.bf16.mxu0 0
    %393 = vmatmul.mubr.bf16.gmra.mxu0 %v252
    %v394 = vpop.f32.mrf.mxu0
    %v395 = vadd.f32 %v273, %v394
    %v396 = vpop.f32.mrf.mxu0
    %v397 = vadd.f32 %v277, %v396
    %v398 = vpop.f32.mrf.mxu0
    %v399 = vpop.f32.mrf.mxu0
    %400 = vdwg.mxu0
    %v401 = vmax.f32 %v395, 0.0
    %v402 = vmax.f32 %v397, 0.0
    %v403 = vpack.c.bf16 %v401, %v401
    %v404 = vpack.c.bf16 %v402, %v402
    %v405 = vld [vmem:[#allocation8] sm:$0xf]
    %v406 = vld [vmem:[#allocation8 + $0x4] sm:$0xf]
    %v407 = vld [vmem:[#allocation8 + $0x8] sm:$0xf]
    %v408 = vld [vmem:[#allocation8 + $0xc] sm:$0xf]
    %v409 = vld [vmem:[#allocation8 + $0x10] sm:$0xf]
    %v410 = vld [vmem:[#allocation8 + $0x14] sm:$0xf]
    %v411 = vld [vmem:[#allocation8 + $0x18] sm:$0xf]
    %v412 = vld [vmem:[#allocation8 + $0x1c] sm:$0xf]
    %v413 = vld [vmem:[#allocation8 + $0x20] sm:$0xf]
    %v414 = vld [vmem:[#allocation8 + $0x24] sm:$0xf]
    %v415 = vld [vmem:[#allocation8 + $0x28] sm:$0xf]
    %v416 = vld [vmem:[#allocation8 + $0x2c] sm:$0xf]
    %v417 = vld [vmem:[#allocation8 + $0x30] sm:$0xf]
    %v418 = vld [vmem:[#allocation8 + $0x34] sm:$0xf]
    %v419 = vld [vmem:[#allocation8 + $0x38] sm:$0xf]
    %v420 = vld [vmem:[#allocation8 + $0x3c] sm:$0xf]
    %v421 = vld [vmem:[#allocation8 + $0x40] sm:$0xf]
    %v422 = vld [vmem:[#allocation8 + $0x44] sm:$0xf]
    %v423 = vld [vmem:[#allocation8 + $0x48] sm:$0xf]
    %v424 = vld [vmem:[#allocation8 + $0x4c] sm:$0xf]
    %v425 = vld [vmem:[#allocation8 + $0x50] sm:$0xf]
    %v426 = vld [vmem:[#allocation8 + $0x54] sm:$0xf]
    %v427 = vld [vmem:[#allocation8 + $0x58] sm:$0xf]
    %v428 = vld [vmem:[#allocation8 + $0x5c] sm:$0xf]
    %v429 = vld [vmem:[#allocation8 + $0x60] sm:$0xf]
    %v430 = vld [vmem:[#allocation8 + $0x64] sm:$0xf]
    %v431 = vld [vmem:[#allocation8 + $0x68] sm:$0xf]
    %v432 = vld [vmem:[#allocation8 + $0x6c] sm:$0xf]
    %v433 = vld [vmem:[#allocation8 + $0x70] sm:$0xf]
    %v434 = vld [vmem:[#allocation8 + $0x74] sm:$0xf]
    %v435 = vld [vmem:[#allocation8 + $0x78] sm:$0xf]
    %v436 = vld [vmem:[#allocation8 + $0x7c] sm:$0xf]
    %v469 = vunpack.c.l.b16 %v405
    %v470 = vunpack.c.l.b16 %v406
    %v471 = vunpack.c.l.b16 %v407
    %v472 = vunpack.c.l.b16 %v408
    %v473 = vunpack.c.l.b16 %v409
    %v474 = vunpack.c.l.b16 %v410
    %v475 = vunpack.c.l.b16 %v411
    %v476 = vunpack.c.l.b16 %v412
    %v477 = vunpack.c.l.b16 %v413
    %v478 = vunpack.c.l.b16 %v414
    %v479 = vunpack.c.l.b16 %v415
    %v480 = vunpack.c.l.b16 %v416
    %v481 = vunpack.c.l.b16 %v417
    %v482 = vunpack.c.l.b16 %v418
    %v483 = vunpack.c.l.b16 %v419
    %v484 = vunpack.c.l.b16 %v420
    %v485 = vunpack.c.l.b16 %v421
    %v486 = vunpack.c.l.b16 %v422
    %v487 = vunpack.c.l.b16 %v423
    %v488 = vunpack.c.l.b16 %v424
    %v489 = vunpack.c.l.b16 %v425
    %v490 = vunpack.c.l.b16 %v426
    %v491 = vunpack.c.l.b16 %v427
    %v492 = vunpack.c.l.b16 %v428
    %v493 = vunpack.c.l.b16 %v429
    %v494 = vunpack.c.l.b16 %v430
    %v495 = vunpack.c.l.b16 %v431
    %v496 = vunpack.c.l.b16 %v432
    %v497 = vunpack.c.l.b16 %v433
    %v498 = vunpack.c.l.b16 %v434
    %v499 = vunpack.c.l.b16 %v435
    %v500 = vunpack.c.l.b16 %v436
    %v501 = vpack.c.b16 %v470, %v469
    %v502 = vpack.c.b16 %v472, %v471
    %v503 = vpack.c.b16 %v474, %v473
    %v504 = vpack.c.b16 %v476, %v475
    %v505 = vpack.c.b16 %v478, %v477
    %v506 = vpack.c.b16 %v480, %v479
    %v507 = vpack.c.b16 %v482, %v481
    %v508 = vpack.c.b16 %v484, %v483
    %v509 = vpack.c.b16 %v486, %v485
    %v510 = vpack.c.b16 %v488, %v487
    %v511 = vpack.c.b16 %v490, %v489
    %v512 = vpack.c.b16 %v492, %v491
    %v513 = vpack.c.b16 %v494, %v493
    %v514 = vpack.c.b16 %v496, %v495
    %v515 = vpack.c.b16 %v498, %v497
    %v516 = vpack.c.b16 %v500, %v499
    %533 = vmatprep.subr.bf16.mxu0 0
    %534 = vmatpush1.bf16.msra.mxu0 %v508
    %535 = vmatprep.subr.bf16.mxu0 0
    %536 = vmatpush1.bf16.msra.mxu0 %v507
    %537 = vmatprep.subr.bf16.mxu0 0
    %538 = vmatpush1.bf16.msra.mxu0 %v506
    %539 = vmatprep.subr.bf16.mxu0 0
    %540 = vmatpush1.bf16.msra.mxu0 %v505
    %541 = vmatprep.subr.bf16.mxu0 0
    %542 = vmatpush1.bf16.msra.mxu0 %v504
    %543 = vmatprep.subr.bf16.mxu0 0
    %544 = vmatpush1.bf16.msra.mxu0 %v503
    %545 = vmatprep.subr.bf16.mxu0 0
    %546 = vmatpush1.bf16.msra.mxu0 %v502
    %547 = vmatprep.subr.bf16.mxu0 0
    %548 = vmatpush1.bf16.msra.mxu0 %v501
    %549 = vmatprep.subr.bf16.mxu0 0
    %550 = vmatpush2.bf16.msra.mxu0 %v516
    %551 = vmatprep.subr.bf16.mxu0 0
    %552 = vmatpush2.bf16.msra.mxu0 %v515
    %553 = vmatprep.subr.bf16.mxu0 0
    %554 = vmatpush2.bf16.msra.mxu0 %v514
    %555 = vmatprep.subr.bf16.mxu0 0
    %556 = vmatpush2.bf16.msra.mxu0 %v513
    %557 = vmatprep.subr.bf16.mxu0 0
    %558 = vmatpush2.bf16.msra.mxu0 %v512
    %559 = vmatprep.subr.bf16.mxu0 0
    %560 = vmatpush2.bf16.msra.mxu0 %v511
    %561 = vmatprep.subr.bf16.mxu0 0
    %562 = vmatpush2.bf16.msra.mxu0 %v510
    %563 = vmatprep.subr.bf16.mxu0 0
    %564 = vmatpush2.bf16.msra.mxu0 %v509
    %565 = vmatprep.mubr.bf16.mxu0 %v404
    %566 = vmatmul.mubr.bf16.gmra.mxu0 %v403
    %v567 = vpop.f32.mrf.mxu0
    %v568 = vadd.f32 %v92, %v567
    %v569 = vpop.f32.mrf.mxu0
    %v570 = vpop.f32.mrf.mxu0
    %v571 = vpop.f32.mrf.mxu0
    %572 = vdwg.mxu0
    %v573 = vlaneseq
    %v574 = vand.u32 %v573, 127
    %vm575 = vcmp.eq.s32.totalorder %v574, 127
    %v576 = vsel %vm575, 1, 0
    %vm577 = vcmp.eq.s32.totalorder %v576, 1
    %v578 = vsel %vm577, %v568, 0.0
    %579 = vadd.xlane.f32.xlu0 %v578
    %v580 = vpop.xlane.xlu0 %579
    %581 = vadd.xlane.f32.xlu0 %v568
    %v582 = vpop.xlane.xlu0 %581
    %v583 = vrot.slane %v582, 4
    %v584 = vadd.f32 %v582, %v583
    %v585 = vrot.slane %v584, 2
    %v586 = vadd.f32 %v584, %v585
    %v587 = vrot.slane %v586, 1
    %v588 = vadd.f32 %v586, %v587
    %s589 = vtos %v588
    %vm590 = vcmask 7168
    %v591 = vsel %vm590, %v580, 0.0
    %592 = vadd.xlane.f32.xlu0 %v591
    %v593 = vpop.xlane.xlu0 %592
    %v594 = vrot.slane %v593, 4
    %v595 = vadd.f32 %v593, %v594
    %v596 = vrot.slane %v595, 2
    %v597 = vadd.f32 %v595, %v596
    %v598 = vrot.slane %v597, 1
    %v599 = vadd.f32 %v597, %v598
    %s600 = vtos %v599
    %s601 = ssub.f32 %s589, %s600
    %s602 = smul.f32 %s601, 0.03125
    %v603 = vstv %s602
    %v604 = vsub.f32 %v580, %v603
    %v605 = vadd.f32 %v568, %v604
    %606 = vst [vmem:[#allocation11] sm:$0xff] %v605
    // Predicated region
    $region42: #{tpu_custom_call.1} parent=1 // pred_check
      _
    $region43: #{tpu_custom_call.1} parent=1 // pred_check_branch
      %608 = sbr.rel (0) target = $region45
    $region44: #{tpu_custom_call.1} parent=1 // pred_region
      %s610 = ssub.s32 128, 128
      %611 = vsyncadd [#allocation4], %s610
      %s613 = sshll.u32 [#allocation11], 4
      %s614 = int_to_ptr.vmem [resolvable:$true] %s613
      %616 = dma.vmem_to_hbm [thread:$0]  %s614, 128, %s5, [#allocation4]
    $region45: #{tpu_custom_call.1} parent=1 // pred_fallthru
      _
    // Predicated region
    $region46: #{tpu_custom_call.1} parent=1 // pred_check
      _
    $region47: #{tpu_custom_call.1} parent=1 // pred_check_branch
      %618 = sbr.rel (0) target = $region49
    $region48: #{tpu_custom_call.1} parent=1 // pred_region
      %619 = dma.done [#allocation4], 128
    $region49: #{tpu_custom_call.1} parent=1 // pred_fallthru
      _
    %620 = vsyncpa [#allocation3], 1
    %621 = vsyncpa [#allocation6], 1
    %622 = vsyncpa [#allocation9], 1
    %623 = vsyncpa [#allocation4], 1

</llo_original>
